<compile_context>
chip_gen: v6e
topology: v6e:2x2x1
jax: 0.10.0
libtpu: 0.0.40
codegen_flags: <defaults>
</compile_context>

<pallas_src>
import functools

import jax
import jax.numpy as jnp
from jax.experimental import pallas as pl
from jax.experimental.pallas import tpu as pltpu


def _round_up(v, m):
    return ((v + m - 1) // m) * m


def _conv_relu_norm_kernel(*refs, K, pad, eps, T, T_TILE, has_halo, mask_tail):
    # Ref layout (all tiles keep T on the 128-wide lane axis):
    #   x_ref    : (1, C_in, T_TILE)   current T tile of the raw NCT input
    #   lh_ref   : (1, C_in, 128)      previous 128 input columns  (only if has_halo)
    #   rh_ref   : (1, C_in, 128)      next 128 input columns      (only if has_halo)
    #   w_ref    : (K, C_out, C_in)    one (C_out, C_in) conv slab per tap
    #   b_ref    : (C_out, 1)          conv bias
    #   g_ref    : (C_out, 1)          layernorm gamma
    #   beta_ref : (C_out, 1)          layernorm beta
    #   o_ref    : (1, C_out, T_TILE)  lane-dense output tile (NCT layout)
    if has_halo:
        x_ref, lh_ref, rh_ref, w_ref, b_ref, g_ref, beta_ref, o_ref = refs
    else:
        x_ref, w_ref, b_ref, g_ref, beta_ref, o_ref = refs

    f32 = jnp.float32
    x_main = x_ref[0]                              # (C_in, T_TILE), native dtype
    c_in = x_main.shape[0]
    t0 = pl.program_id(1) * T_TILE                 # first output column of this tile

    # Zero the out-of-range tail of a partial last tile so garbage from the
    # truncated block cannot leak into valid columns through the conv taps.
    if mask_tail:
        lane = jax.lax.broadcasted_iota(jnp.int32, (1, T_TILE), 1)
        x_main = jnp.where(lane < T - t0, x_main, jnp.zeros_like(x_main))

    # --- Conv1d: K accumulating MXU matmuls over one extended tile ----------
    if K > 1:
        if has_halo:
            iota_p = jax.lax.broadcasted_iota(jnp.int32, (1, pad), 1)
            # left halo -> input columns [t0 - pad, t0); zero where col < 0
            lcols = lh_ref[0][:, 128 - pad:]
            lcols = jnp.where(iota_p >= pad - t0, lcols, jnp.zeros_like(lcols))
            # right halo -> input columns [t0 + T_TILE, t0 + T_TILE + pad);
            # zero where col >= T (also fully zero on the clamped last tile)
            rcols = rh_ref[0][:, :pad]
            rcols = jnp.where(iota_p < T - (t0 + T_TILE), rcols,
                              jnp.zeros_like(rcols))
        else:
            # single T tile: both boundaries are the conv's zero padding
            lcols = jnp.zeros((c_in, pad), x_main.dtype)
            rcols = lcols
        ext = jnp.concatenate([lcols, x_main, rcols], axis=1)  # (C_in, T_TILE+2*pad)

    acc = None
    for j in range(K):                              # K is tiny and static
        if K == 1 or j == pad:
            x_op = x_main                           # centre tap needs no shift
        else:
            x_op = ext[:, j:j + T_TILE]             # shifted tap operand
        y = jnp.dot(w_ref[j], x_op, preferred_element_type=f32)
        acc = y if acc is None else acc + y         # (C_out, T_TILE) f32

    acc = acc + b_ref[...].astype(f32)              # conv bias
    acc = jnp.maximum(acc, 0.0)                     # ReLU

    # --- LayerNorm over channels (axis 0), fused single pass ----------------
    c_out = acc.shape[0]
    inv_c = 1.0 / c_out
    mean = jnp.sum(acc, axis=0, keepdims=True) * inv_c
    mean_sq = jnp.sum(acc * acc, axis=0, keepdims=True) * inv_c
    var = mean_sq - mean * mean
    inv = jax.lax.rsqrt(var + eps)
    out = (acc - mean) * inv * g_ref[...].astype(f32) + beta_ref[...].astype(f32)

    # Dropout: module default p=0.0 (and eval-mode behavior) -> identity.
    # TODO(synk): training-mode dropout (p > 0) would need pltpu.prng_* masking.
    o_ref[0] = out.astype(o_ref.dtype)


def _pick_t_tile(B, C_in, C_out, K, T, itemsize, t_tile_max, vmem_budget):
    """Choose the T tile: big enough to amortize per-step overhead, small
    enough to fit the VMEM budget (sized for v7x's 64 MiB), and split so that
    v7x's two TensorCores both get grid steps when B == 1."""

    def est(tile, with_halo):
        io = 2 * (C_in + C_out) * tile * itemsize            # double-buffered blocks
        halo = (2 * 2 * C_in * 128 * itemsize) if with_halo else 0
        params = (K * C_out * C_in + 3 * C_out) * itemsize
        # in-kernel temporaries: extended tile + one tap operand (native dtype)
        # plus the f32 accumulator / normalized output.
        tmp = 2 * C_in * tile * itemsize + 3 * C_out * tile * 4
        return io + halo + params + tmp

    if T <= 128:
        return T, 1
    if B >= 2 and T <= t_tile_max and est(T, False) <= vmem_budget:
        return T, 1                                           # one full-width tile
    tile = min(_round_up(T, 128), max(128, _round_up(t_tile_max, 128)))
    if B == 1 and T <= tile:
        # v7x megacore: make sure there are >= 2 grid steps.
        tile = max(128, _round_up(pl.cdiv(T, 2), 128))
    while tile > 128 and est(tile, True) > vmem_budget:
        tile -= 128
    return tile, pl.cdiv(T, tile)


def conv_relu_norm(x_nct, weight, bias, gamma, beta, *, eps=1e-5, t_tile_max=2048):
    """x_nct: (B, C_in, T); weight: (C_out, C_in, K) (PyTorch Conv1d layout).

    Returns (B, C_out, T) in x_nct.dtype (same as the PyTorch module)."""
    B, C_in, T = x_nct.shape
    C_out, C_in_w, K = weight.shape
    assert C_in_w == C_in
    assert K % 2 == 1, "use odd kernel_size so output length == input length"
    pad = K // 2

    itemsize = jnp.dtype(x_nct.dtype).itemsize
    VMEM_BUDGET = 36 * 1024 * 1024
    T_TILE, NT = _pick_t_tile(B, C_in, C_out, K, T, itemsize, t_tile_max,
                              VMEM_BUDGET)
    has_halo = (K > 1) and (NT > 1)                 # K == 1 never pays halo DMAs
    mask_tail = (T % T_TILE != 0) and (K > 1)
    if has_halo:
        assert pad <= 128, "kernel_size too large for the 128-wide halo blocks"

    # Conv weights as (K, C_out, C_in): one MXU slab per tap (tiny reshape).
    w_k = jnp.transpose(weight, (2, 0, 1))
    b2 = bias.reshape(C_out, 1)
    g2 = gamma.reshape(C_out, 1)
    be2 = beta.reshape(C_out, 1)

    in_specs = [pl.BlockSpec((1, C_in, T_TILE), lambda b, t: (b, 0, t))]
    args = [x_nct]
    if has_halo:
        stride = T_TILE // 128                      # T_TILE is a multiple of 128
        last_t = NT - 1
        # left halo: previous 128 input columns (clamped at the left edge;
        # the in-kernel mask zeroes anything that maps to columns < 0)
        in_specs.append(pl.BlockSpec(
            (1, C_in, 128),
            lambda b, t: (b, 0, jnp.maximum(t * stride - 1, 0))))
        # right halo: next 128 input columns (clamped for the last tile;
        # the in-kernel mask zeroes anything that maps to columns >= T)
        in_specs.append(pl.BlockSpec(
            (1, C_in, 128),
            lambda b, t: (b, 0, jnp.minimum(t + 1, last_t) * stride)))
        args += [x_nct, x_nct]
    in_specs += [
        pl.BlockSpec((K, C_out, C_in), lambda b, t: (0, 0, 0)),
        pl.BlockSpec((C_out, 1), lambda b, t: (0, 0)),
        pl.BlockSpec((C_out, 1), lambda b, t: (0, 0)),
        pl.BlockSpec((C_out, 1), lambda b, t: (0, 0)),
    ]
    args += [w_k, b2, g2, be2]

    kernel = functools.partial(
        _conv_relu_norm_kernel, K=K, pad=pad, eps=eps, T=T, T_TILE=T_TILE,
        has_halo=has_halo, mask_tail=mask_tail)

    cost = pl.CostEstimate(
        flops=2 * B * T * K * C_in * C_out + 10 * B * T * C_out,
        transcendentals=B * T,
        bytes_accessed=(B * C_in * T * itemsize
                        + (2 * B * NT * C_in * 128 * itemsize if has_halo else 0)
                        + (int(w_k.size) + 3 * C_out) * itemsize
                        + B * C_out * T * itemsize),
    )

    return pl.pallas_call(
        kernel,
        out_shape=jax.ShapeDtypeStruct((B, C_out, T), x_nct.dtype),
        grid_spec=pltpu.PrefetchScalarGridSpec(
            num_scalar_prefetch=0,
            grid=(B, NT),
            in_specs=in_specs,
            out_specs=pl.BlockSpec((1, C_out, T_TILE), lambda b, t: (b, 0, t)),
        ),
        compiler_params=pltpu.CompilerParams(
            dimension_semantics=("parallel", "parallel"),
            vmem_limit_bytes=48 * 1024 * 1024,   # v7x-safe (64 MiB physical)
        ),
        cost_estimate=cost,
    )(*args)


def _reference(x_nct, weight, bias, gamma, beta, eps=1e-5):
    """Pure-JAX reference matching the PyTorch forward."""
    B, C_in, T = x_nct.shape
    C_out, _, K = weight.shape
    pad = K // 2
    x_btc = jnp.transpose(x_nct, (0, 2, 1)).astype(jnp.float32)
    x_padded = jnp.pad(x_btc, ((0, 0), (pad, pad), (0, 0)))
    w_taps = jnp.transpose(weight, (2, 1, 0)).astype(jnp.float32)  # (K, C_in, C_out)
    conv = jnp.zeros((B, T, C_out), jnp.float32)
    for j in range(K):
        conv = conv + jnp.einsum("btc,cd->btd", x_padded[:, j:j + T, :], w_taps[j])
    conv = conv + bias.astype(jnp.float32)
    act = jnp.maximum(conv, 0.0)
    mean = jnp.mean(act, axis=-1, keepdims=True)
    var = jnp.mean((act - mean) ** 2, axis=-1, keepdims=True)
    normed = (act - mean) * jax.lax.rsqrt(var + eps)
    out = normed * gamma.astype(jnp.float32) + beta.astype(jnp.float32)
    return jnp.transpose(out, (0, 2, 1)).astype(x_nct.dtype)


def _run_case(key, B, C_in, C_out, K, T, **kwargs):
    kx, kw, kb, kg, kbe = jax.random.split(key, 5)
    x = jax.random.normal(kx, (B, C_in, T), dtype=jnp.float32)
    fan_in = C_in * K
    bound = 1.0 / (fan_in ** 0.5)
    weight = jax.random.uniform(kw, (C_out, C_in, K),
                                minval=-bound, maxval=bound, dtype=jnp.float32)
    bias = jax.random.uniform(kb, (C_out,), minval=-bound, maxval=bound,
                              dtype=jnp.float32)
    gamma = 1.0 + 0.1 * jax.random.normal(kg, (C_out,), dtype=jnp.float32)
    beta = 0.1 * jax.random.normal(kbe, (C_out,), dtype=jnp.float32)

    out = conv_relu_norm(x, weight, bias, gamma, beta, **kwargs)
    out = jax.block_until_ready(out)
    ref = _reference(x, weight, bias, gamma, beta)

    assert out.shape == (B, C_out, T), out.shape
    assert out.dtype == x.dtype, out.dtype
    assert jnp.allclose(out, ref, atol=1e-4, rtol=1e-4), (
        f"mismatch vs reference (B={B}, C_in={C_in}, C_out={C_out}, K={K}, T={T})")


if __name__ == "__main__":
    key = jax.random.PRNGKey(0)
    k1, k2, k3, k4 = jax.random.split(key, 4)
    # Module default kernel_size=1: no halo blocks are declared at all.
    _run_case(k1, B=2, C_in=16, C_out=32, K=1, T=16)
    # kernel_size=3, single T tile (conv zero padding handled in-kernel).
    _run_case(k2, B=2, C_in=16, C_out=32, K=3, T=16)
    # kernel_size=3, tiled T axis with 128-wide halo blocks (exact tiles,
    # B == 1 exercises the megacore T split).
    _run_case(k3, B=1, C_in=8, C_out=16, K=3, T=384, t_tile_max=128)
    # kernel_size=5, tiled T with a ragged final tile (masked tail columns).
    _run_case(k4, B=2, C_in=8, C_out=16, K=5, T=300, t_tile_max=128)
    print("KERNEL_OK")
</pallas_src>

<mosaic_0001>
module attributes {stable_mosaic.version = 11 : i64} {
  func.func @_conv_relu_norm_kernel(%arg0: i32, %arg1: i32, %arg2: memref<1x16x16xf32, #tpu.memory_space<vmem>>, %arg3: memref<1x32x16xf32, #tpu.memory_space<vmem>>, %arg4: memref<32x1xf32, #tpu.memory_space<vmem>>, %arg5: memref<32x1xf32, #tpu.memory_space<vmem>>, %arg6: memref<32x1xf32, #tpu.memory_space<vmem>>, %arg7: memref<1x32x16xf32, #tpu.memory_space<vmem>>) attributes {dimension_semantics = [#tpu.dimension_semantics<parallel>, #tpu.dimension_semantics<parallel>], iteration_bounds = array<i64: 2, 1>, scalar_prefetch = 0 : i64, scratch_operands = 0 : i64, tpu.core_type = #tpu.core_type<tc>, window_params = [{transform_indices = @transform_0, window_bounds = array<i64: 1, 16, 16>}, {pipeline_mode = #tpu.pipeline_mode<synchronous>, transform_indices = @transform_1, window_bounds = array<i64: 1, 32, 16>}, {pipeline_mode = #tpu.pipeline_mode<synchronous>, transform_indices = @transform_2, window_bounds = array<i64: 32, 1>}, {pipeline_mode = #tpu.pipeline_mode<synchronous>, transform_indices = @transform_3, window_bounds = array<i64: 32, 1>}, {pipeline_mode = #tpu.pipeline_mode<synchronous>, transform_indices = @transform_4, window_bounds = array<i64: 32, 1>}, {transform_indices = @transform_5, window_bounds = array<i64: 1, 32, 16>}]} {
    %c0 = arith.constant 0 : index
    %c0_0 = arith.constant 0 : index
    %c0_1 = arith.constant 0 : index
    %0 = vector.load %arg2[%c0, %c0_0, %c0_1] : memref<1x16x16xf32, #tpu.memory_space<vmem>>, vector<1x16x16xf32>
    %1 = vector.shape_cast %0 : vector<1x16x16xf32> to vector<16x16xf32>
    %c0_2 = arith.constant 0 : index
    %c0_3 = arith.constant 0 : index
    %c0_4 = arith.constant 0 : index
    %2 = vector.load %arg3[%c0_2, %c0_3, %c0_4] : memref<1x32x16xf32, #tpu.memory_space<vmem>>, vector<1x32x16xf32>
    %3 = vector.shape_cast %2 : vector<1x32x16xf32> to vector<32x16xf32>
    %cst = arith.constant dense<0.000000e+00> : vector<32x16xf32>
    %4 = tpu.matmul %3, %1, %cst {dimension_numbers = #tpu.dot_dimension_numbers<[1], [0], [0], [1], [0, 0, 1, 1], [], []>} : vector<32x16xf32>, vector<16x16xf32>, vector<32x16xf32> -> vector<32x16xf32>
    %c0_5 = arith.constant 0 : index
    %c0_6 = arith.constant 0 : index
    %5 = vector.load %arg4[%c0_5, %c0_6] : memref<32x1xf32, #tpu.memory_space<vmem>>, vector<32x1xf32>
    %6 = vector.broadcast %5 : vector<32x1xf32> to vector<32x16xf32>
    %7 = arith.addf %4, %6 : vector<32x16xf32>
    %cst_7 = arith.constant 0.000000e+00 : f32
    %8 = vector.broadcast %cst_7 : f32 to vector<32x16xf32>
    %9 = arith.maximumf %7, %8 : vector<32x16xf32>
    %cst_8 = arith.constant dense<0.000000e+00> : vector<16xf32>
    %10 = vector.multi_reduction <add>, %9, %cst_8 [0] : vector<32x16xf32> to vector<16xf32>
    %11 = vector.shape_cast %10 : vector<16xf32> to vector<1x16xf32>
    %cst_9 = arith.constant 3.125000e-02 : f32
    %12 = vector.broadcast %cst_9 : f32 to vector<1x16xf32>
    %13 = arith.mulf %11, %12 : vector<1x16xf32>
    %14 = arith.mulf %9, %9 : vector<32x16xf32>
    %cst_10 = arith.constant dense<0.000000e+00> : vector<16xf32>
    %15 = vector.multi_reduction <add>, %14, %cst_10 [0] : vector<32x16xf32> to vector<16xf32>
    %16 = vector.shape_cast %15 : vector<16xf32> to vector<1x16xf32>
    %cst_11 = arith.constant 3.125000e-02 : f32
    %17 = vector.broadcast %cst_11 : f32 to vector<1x16xf32>
    %18 = arith.mulf %16, %17 : vector<1x16xf32>
    %19 = arith.mulf %13, %13 : vector<1x16xf32>
    %20 = arith.subf %18, %19 : vector<1x16xf32>
    %cst_12 = arith.constant 9.99999974E-6 : f32
    %21 = vector.broadcast %cst_12 : f32 to vector<1x16xf32>
    %22 = arith.addf %20, %21 : vector<1x16xf32>
    %23 = math.rsqrt %22 : vector<1x16xf32>
    %24 = vector.broadcast %13 : vector<1x16xf32> to vector<32x16xf32>
    %25 = arith.subf %9, %24 : vector<32x16xf32>
    %26 = vector.broadcast %23 : vector<1x16xf32> to vector<32x16xf32>
    %27 = arith.mulf %25, %26 : vector<32x16xf32>
    %c0_13 = arith.constant 0 : index
    %c0_14 = arith.constant 0 : index
    %28 = vector.load %arg5[%c0_13, %c0_14] : memref<32x1xf32, #tpu.memory_space<vmem>>, vector<32x1xf32>
    %29 = vector.broadcast %28 : vector<32x1xf32> to vector<32x16xf32>
    %30 = arith.mulf %27, %29 : vector<32x16xf32>
    %c0_15 = arith.constant 0 : index
    %c0_16 = arith.constant 0 : index
    %31 = vector.load %arg6[%c0_15, %c0_16] : memref<32x1xf32, #tpu.memory_space<vmem>>, vector<32x1xf32>
    %32 = vector.broadcast %31 : vector<32x1xf32> to vector<32x16xf32>
    %33 = arith.addf %30, %32 : vector<32x16xf32>
    %c0_17 = arith.constant 0 : index
    %c0_18 = arith.constant 0 : index
    %c0_19 = arith.constant 0 : index
    %34 = vector.load %arg7[%c0_17, %c0_18, %c0_19] : memref<1x32x16xf32, #tpu.memory_space<vmem>>, vector<1x32x16xf32>
    %35 = vector.shape_cast %34 : vector<1x32x16xf32> to vector<32x16xf32>
    %36 = vector.shape_cast %33 : vector<32x16xf32> to vector<1x32x16xf32>
    tpu.vector_store %arg7[%c0_17, %c0_18, %c0_19], %36 {strides = array<i32>} : memref<1x32x16xf32, #tpu.memory_space<vmem>>, vector<1x32x16xf32>,
    return
  }
  func.func @transform_0(%arg0: i32, %arg1: i32) -> (i32, i32, i32) {
    %c0_i32 = arith.constant 0 : i32
    %c0_i32_0 = arith.constant 0 : i32
    return %arg0, %c0_i32, %arg1 : i32, i32, i32
  }
  func.func @transform_1(%arg0: i32, %arg1: i32) -> (i32, i32, i32) {
    %c0_i32 = arith.constant 0 : i32
    %c0_i32_0 = arith.constant 0 : i32
    %c0_i32_1 = arith.constant 0 : i32
    %c0_i32_2 = arith.constant 0 : i32
    return %c0_i32, %c0_i32_0, %c0_i32_1 : i32, i32, i32
  }
  func.func @transform_2(%arg0: i32, %arg1: i32) -> (i32, i32) {
    %c0_i32 = arith.constant 0 : i32
    %c0_i32_0 = arith.constant 0 : i32
    %c0_i32_1 = arith.constant 0 : i32
    return %c0_i32, %c0_i32_0 : i32, i32
  }
  func.func @transform_3(%arg0: i32, %arg1: i32) -> (i32, i32) {
    %c0_i32 = arith.constant 0 : i32
    %c0_i32_0 = arith.constant 0 : i32
    %c0_i32_1 = arith.constant 0 : i32
    return %c0_i32, %c0_i32_0 : i32, i32
  }
  func.func @transform_4(%arg0: i32, %arg1: i32) -> (i32, i32) {
    %c0_i32 = arith.constant 0 : i32
    %c0_i32_0 = arith.constant 0 : i32
    %c0_i32_1 = arith.constant 0 : i32
    return %c0_i32, %c0_i32_0 : i32, i32
  }
  func.func @transform_5(%arg0: i32, %arg1: i32) -> (i32, i32, i32) {
    %c0_i32 = arith.constant 0 : i32
    %c0_i32_0 = arith.constant 0 : i32
    return %arg0, %c0_i32, %arg1 : i32, i32, i32
  }
}

</mosaic_0001>

<llo_original>
// kernel: tpu_custom_call.1
$region0: #{tpu_custom_call.1}
  #allocation0 [shape = 'u32[]', space=smem, size = 0x4, offset = 0x4, fixed_abs, tag = 'smem constant byte address 0x4 - core index']
  #allocation1 [shape = 'u32[144,128]{1,0:T(1,128)}', space=vmem, size = 0x12000, scoped, tag = 'internal scratch']
  %s0 = inlined_call_operand.vmem [shape: f32[2,16,16], index: 0, kind: input, shape index: {}]
  %s1 = inlined_call_operand.vmem [shape: f32[1,32,16], index: 1, kind: input, shape index: {}]
  %s2 = inlined_call_operand.vmem [shape: f32[32,1], index: 2, kind: input, shape index: {}]
  %s3 = inlined_call_operand.vmem [shape: f32[32,1], index: 3, kind: input, shape index: {}]
  %s4 = inlined_call_operand.vmem [shape: f32[32,1], index: 4, kind: input, shape index: {}]
  %s5 = inlined_call_operand.vmem [shape: f32[2,32,16], index: 5, kind: output, shape index: {}]
  %s6 = sld [smem:[#allocation0]]
  $region53: #{tpu_custom_call.1} parent=0
    _
  %s8 = ssub.s32 1, %s6
  %s9 = scalar_select 0, %s8, %s6
  loop: start=0, step=1, limit=4
  $region2: #{tpu_custom_call.1} parent=0 // loop_pre_header
    _
  $region3: #{tpu_custom_call.1} parent=0 // loop_header
    %s11 = sphi 0, %s15
    %p12 = scmp.ge.s32.totalorder %s11, 4
    %s18 = sphi 0, %s30
    %s19 = sphi 0, %s26
    %s20 = sphi 0, %s18
    %s21 = sphi 0, %s19
    %s22 = sphi 0, %s20
    %s23 = sphi 0, %s21
    %s35 = sphi 0, %s37
    %s38 = sphi 0, %s35
    %s39 = sphi 0, %s38
    %s55 = sphi 0, %s39
    %s59 = sphi 0, %s59
    %s61 = sphi 0, %s59
    %s62 = sphi 0, %s61
    %s76 = sphi 0, %s62
    %s80 = sphi 0, %s80
    %s82 = sphi 0, %s80
    %s83 = sphi 0, %s82
    %s97 = sphi 0, %s83
    %s101 = sphi 0, %s101
    %s103 = sphi 0, %s101
    %s104 = sphi 0, %s103
    %s118 = sphi 0, %s104
    %s122 = sphi 0, %s122
    %s124 = sphi 0, %s122
    %s125 = sphi 0, %s124
    %s139 = sphi 0, %s125
    %s147 = sphi 0, %s149
    %s150 = sphi 0, %s147
    %s151 = sphi 0, %s150
    %s167 = sphi 0, %s151
  $region4: #{tpu_custom_call.1} parent=0 // loop_header_branch
    %14 = sbr.rel (%p12) target = $region8
  $region5: #{tpu_custom_call.1} parent=0 // loop_body
    %s16 = ssub.s32 %s11, 1
    %s17 = ssub.s32 %s11, 2
    %s24 = sadd.s32 1, %s19
    %p25 = scmp.ge.s32.totalorder %s24, 1
    %s26 = scalar_select %p25, 0, %s24
    %s27 = sadd.s32 1, %s18
    %s28 = scalar_select %p25, %s27, %s18
    %p29 = scmp.ge.s32.totalorder %s28, 2
    %s30 = scalar_select %p29, 0, %s28
    %s31 = ssub.s32 %s18, %s30
    %s32 = ssub.s32 %s19, %s26
    %s33 = sor.u32 %s31, %s32
    %p34 = scmp.eq.s32.totalorder %s33, 0
    %s36 = sadd.s32 %s35, 1
    %s37 = scalar_select %p34, %s35, %s36
    %p40 = pneg %p34
    %p41 = scmp.eq.s32.totalorder %s11, 1
    %p42 = por %p40, %p41
    %p43 = scmp.ne.s32.totalorder %s35, %s38
    %p44 = scmp.eq.s32.totalorder %s11, 0
    %p45 = por %p43, %p44
    %p46 = scmp.ne.s32.totalorder %s35, %s38
    %p47 = scmp.eq.s32.totalorder %s16, 1
    %p48 = por %p46, %p47
    %p49 = scmp.ne.s32.totalorder %s38, %s39
    %p50 = scmp.eq.s32.totalorder %s16, 0
    %p51 = por %p49, %p50
    %p52 = scmp.ne.s32.totalorder %s38, %s39
    %p53 = scmp.eq.s32.totalorder %s17, 1
    %p54 = por %p52, %p53
    %p56 = scmp.ne.s32.totalorder %s39, %s55
    %p57 = scmp.eq.s32.totalorder %s17, 0
    %p58 = por %p56, %p57
    %s60 = sadd.s32 %s59, 1
    %p63 = scmp.eq.s32.totalorder %s11, 1
    %p64 = scmp.ne.s32.totalorder %s59, %s61
    %p65 = scmp.eq.s32.totalorder %s11, 0
    %p66 = por %p64, %p65
    %p67 = scmp.ne.s32.totalorder %s59, %s61
    %p68 = scmp.eq.s32.totalorder %s16, 1
    %p69 = por %p67, %p68
    %p70 = scmp.ne.s32.totalorder %s61, %s62
    %p71 = scmp.eq.s32.totalorder %s16, 0
    %p72 = por %p70, %p71
    %p73 = scmp.ne.s32.totalorder %s61, %s62
    %p74 = scmp.eq.s32.totalorder %s17, 1
    %p75 = por %p73, %p74
    %p77 = scmp.ne.s32.totalorder %s62, %s76
    %p78 = scmp.eq.s32.totalorder %s17, 0
    %p79 = por %p77, %p78
    %s81 = sadd.s32 %s80, 1
    %p84 = scmp.eq.s32.totalorder %s11, 1
    %p85 = scmp.ne.s32.totalorder %s80, %s82
    %p86 = scmp.eq.s32.totalorder %s11, 0
    %p87 = por %p85, %p86
    %p88 = scmp.ne.s32.totalorder %s80, %s82
    %p89 = scmp.eq.s32.totalorder %s16, 1
    %p90 = por %p88, %p89
    %p91 = scmp.ne.s32.totalorder %s82, %s83
    %p92 = scmp.eq.s32.totalorder %s16, 0
    %p93 = por %p91, %p92
    %p94 = scmp.ne.s32.totalorder %s82, %s83
    %p95 = scmp.eq.s32.totalorder %s17, 1
    %p96 = por %p94, %p95
    %p98 = scmp.ne.s32.totalorder %s83, %s97
    %p99 = scmp.eq.s32.totalorder %s17, 0
    %p100 = por %p98, %p99
    %s102 = sadd.s32 %s101, 1
    %p105 = scmp.eq.s32.totalorder %s11, 1
    %p106 = scmp.ne.s32.totalorder %s101, %s103
    %p107 = scmp.eq.s32.totalorder %s11, 0
    %p108 = por %p106, %p107
    %p109 = scmp.ne.s32.totalorder %s101, %s103
    %p110 = scmp.eq.s32.totalorder %s16, 1
    %p111 = por %p109, %p110
    %p112 = scmp.ne.s32.totalorder %s103, %s104
    %p113 = scmp.eq.s32.totalorder %s16, 0
    %p114 = por %p112, %p113
    %p115 = scmp.ne.s32.totalorder %s103, %s104
    %p116 = scmp.eq.s32.totalorder %s17, 1
    %p117 = por %p115, %p116
    %p119 = scmp.ne.s32.totalorder %s104, %s118
    %p120 = scmp.eq.s32.totalorder %s17, 0
    %p121 = por %p119, %p120
    %s123 = sadd.s32 %s122, 1
    %p126 = scmp.eq.s32.totalorder %s11, 1
    %p127 = scmp.ne.s32.totalorder %s122, %s124
    %p128 = scmp.eq.s32.totalorder %s11, 0
    %p129 = por %p127, %p128
    %p130 = scmp.ne.s32.totalorder %s122, %s124
    %p131 = scmp.eq.s32.totalorder %s16, 1
    %p132 = por %p130, %p131
    %p133 = scmp.ne.s32.totalorder %s124, %s125
    %p134 = scmp.eq.s32.totalorder %s16, 0
    %p135 = por %p133, %p134
    %p136 = scmp.ne.s32.totalorder %s124, %s125
    %p137 = scmp.eq.s32.totalorder %s17, 1
    %p138 = por %p136, %p137
    %p140 = scmp.ne.s32.totalorder %s125, %s139
    %p141 = scmp.eq.s32.totalorder %s17, 0
    %p142 = por %p140, %p141
    %s143 = ssub.s32 %s18, %s30
    %s144 = ssub.s32 %s19, %s26
    %s145 = sor.u32 %s143, %s144
    %p146 = scmp.eq.s32.totalorder %s145, 0
    %s148 = sadd.s32 %s147, 1
    %s149 = scalar_select %p146, %s147, %s148
    %p152 = pneg %p146
    %p153 = scmp.eq.s32.totalorder %s11, 1
    %p154 = por %p152, %p153
    %p155 = scmp.ne.s32.totalorder %s147, %s150
    %p156 = scmp.eq.s32.totalorder %s11, 0
    %p157 = por %p155, %p156
    %p158 = scmp.ne.s32.totalorder %s147, %s150
    %p159 = scmp.eq.s32.totalorder %s16, 1
    %p160 = por %p158, %p159
    %p161 = scmp.ne.s32.totalorder %s150, %s151
    %p162 = scmp.eq.s32.totalorder %s16, 0
    %p163 = por %p161, %p162
    %p164 = scmp.ne.s32.totalorder %s150, %s151
    %p165 = scmp.eq.s32.totalorder %s17, 1
    %p166 = por %p164, %p165
    %p168 = scmp.ne.s32.totalorder %s151, %s167
    %p169 = scmp.eq.s32.totalorder %s17, 0
    %p170 = por %p168, %p169
    %p171 = scmp.le.s32.totalorder 1, %s11
    %p172 = scmp.lt.s32.totalorder %s11, 3
    %p173 = pnand %p171, %p172
    %p174 = pneg %p173
    // Predicated region
    $region9: #{tpu_custom_call.1} parent=5 // pred_check
      _
    $region10: #{tpu_custom_call.1} parent=5 // pred_check_branch
      %176 = sbr.rel (%p173) target = $region12
    $region11: #{tpu_custom_call.1} parent=5 // pred_region
      %s177 = ssub.s32 %s11, 1
      // Predicated region
      $region13: #{tpu_custom_call.1} parent=11 // pred_check
        %p178 = pneg %p72
      $region14: #{tpu_custom_call.1} parent=11 // pred_check_branch
        %180 = sbr.rel (%p178) target = $region16
      $region15: #{tpu_custom_call.1} parent=11 // pred_region
        _
      $region16: #{tpu_custom_call.1} parent=11 // pred_fallthru
        _
      // Predicated region
      $region17: #{tpu_custom_call.1} parent=11 // pred_check
        %p181 = pneg %p93
      $region18: #{tpu_custom_call.1} parent=11 // pred_check_branch
        %183 = sbr.rel (%p181) target = $region20
      $region19: #{tpu_custom_call.1} parent=11 // pred_region
        _
      $region20: #{tpu_custom_call.1} parent=11 // pred_fallthru
        _
      // Predicated region
      $region21: #{tpu_custom_call.1} parent=11 // pred_check
        %p184 = pneg %p114
      $region22: #{tpu_custom_call.1} parent=11 // pred_check_branch
        %186 = sbr.rel (%p184) target = $region24
      $region23: #{tpu_custom_call.1} parent=11 // pred_region
        _
      $region24: #{tpu_custom_call.1} parent=11 // pred_fallthru
        _
      // Predicated region
      $region25: #{tpu_custom_call.1} parent=11 // pred_check
        %p187 = pneg %p135
      $region26: #{tpu_custom_call.1} parent=11 // pred_check_branch
        %189 = sbr.rel (%p187) target = $region28
      $region27: #{tpu_custom_call.1} parent=11 // pred_region
        _
      $region28: #{tpu_custom_call.1} parent=11 // pred_fallthru
        _
    $region12: #{tpu_custom_call.1} parent=5 // pred_fallthru
      _
    %p190 = scmp.lt.s32.totalorder %s11, 2
    // Predicated region
    $region29: #{tpu_custom_call.1} parent=5 // pred_check
      %p191 = pneg %p190
    $region30: #{tpu_custom_call.1} parent=5 // pred_check_branch
      %193 = sbr.rel (%p191) target = $region32
    $region31: #{tpu_custom_call.1} parent=5 // pred_region
      // Predicated region
      $region33: #{tpu_custom_call.1} parent=31 // pred_check
        %p194 = pneg %p45
      $region34: #{tpu_custom_call.1} parent=31 // pred_check_branch
        %196 = sbr.rel (%p194) target = $region36
      $region35: #{tpu_custom_call.1} parent=31 // pred_region
        %p197 = scmp.lt.s32.totalorder %s18, 1
        %s198 = scalar_select %p197, %s18, 1
        %p199 = scmp.lt.s32.totalorder %s19, 0
        %s200 = scalar_select %p199, %s19, 0
        %s201 = smul.addr %s198, 2
        %s202 = sadd.s32 %s200, %s201
        %s203 = smul.addr %s202, 8
        %s204 = scalar_lea.vmem %s0, %s203
      $region36: #{tpu_custom_call.1} parent=31 // pred_fallthru
        _
    $region32: #{tpu_custom_call.1} parent=5 // pred_fallthru
      _
    %p205 = scmp.le.s32.totalorder 1, %s11
    %p206 = scmp.lt.s32.totalorder %s11, 3
    %p207 = pnand %p205, %p206
    %p208 = pneg %p207
    // Predicated region
    $region37: #{tpu_custom_call.1} parent=5 // pred_check
      _
    $region38: #{tpu_custom_call.1} parent=5 // pred_check_branch
      %210 = sbr.rel (%p207) target = $region40
    $region39: #{tpu_custom_call.1} parent=5 // pred_region
      %s211 = ssub.s32 %s11, 1
      %p212 = scmp.lt.s32.totalorder %s20, 1
      %s213 = scalar_select %p212, %s20, 1
      %p214 = scmp.lt.s32.totalorder %s21, 0
      %s215 = scalar_select %p214, %s21, 0
      %s216 = smul.addr %s213, 2
      %s217 = sadd.s32 %s215, %s216
      %s218 = smul.addr %s217, 8
      %s219 = scalar_lea.vmem %s0, %s218
      %p220 = pneg %p51
      %p221 = pneg %p48
      %p222 = pneg %p72
      %p223 = pneg %p69
      %p224 = pneg %p93
      %p225 = pneg %p90
      %p226 = pneg %p114
      %p227 = pneg %p111
      %p228 = pneg %p135
      %p229 = pneg %p132
      %p230 = pneg %p163
      %p231 = pneg %p160
      %p232 = scmp.lt.s32.totalorder %s20, 1
      %s233 = scalar_select %p232, %s20, 1
      %p234 = scmp.lt.s32.totalorder %s21, 0
      %s235 = scalar_select %p234, %s21, 0
      %s236 = smul.addr %s233, 4
      %s237 = sadd.s32 %s235, %s236
      %s238 = smul.addr %s237, 8
      %s239 = scalar_lea.vmem %s5, %s238
      %p240 = scmp.lt.s32.totalorder %s20, 1
      %s241 = scalar_select %p240, %s20, 1
      %p242 = scmp.lt.s32.totalorder %s21, 0
      %s243 = scalar_select %p242, %s21, 0
      %s244 = smul.addr %s241, 2
      %s245 = sadd.s32 %s243, %s244
      %s246 = smul.addr %s245, 8
      %s247 = scalar_lea.vmem %s0, %s246
      %p248 = scmp.lt.s32.totalorder %s20, 1
      %s249 = scalar_select %p248, %s20, 1
      %p250 = scmp.lt.s32.totalorder %s21, 0
      %s251 = scalar_select %p250, %s21, 0
      %s252 = smul.addr %s249, 4
      %s253 = sadd.s32 %s251, %s252
      %s254 = smul.addr %s253, 8
      %s255 = scalar_lea.vmem %s5, %s254
      %v256 = vld [vmem:[%s247] sm:$0xff]
      %v257 = vld [vmem:[%s247 + $0x8] sm:$0xff]
      %v258 = vld [vmem:[%s1] sm:$0xff]
      %v259 = vld [vmem:[%s1 + $0x8] sm:$0xff]
      %v260 = vld [vmem:[%s1 + $0x10] sm:$0xff]
      %v261 = vld [vmem:[%s1 + $0x18] sm:$0xff]
      %v262 = vld [vmem:[%s2] sm:$0xff]
      %v263 = vld [vmem:[%s2 + $0x8] sm:$0xff]
      %v264 = vld [vmem:[%s2 + $0x10] sm:$0xff]
      %v265 = vld [vmem:[%s2 + $0x18] sm:$0xff]
      %267 = vset.pattern.permute.xlu0 0
      %268 = vperm.xlu0 %267, %v262
      %v269 = vpop.permute.xlu0 %268
      %272 = vset.pattern.permute.xlu0 0
      %273 = vperm.xlu0 %272, %v263
      %v274 = vpop.permute.xlu0 %273
      %277 = vset.pattern.permute.xlu0 0
      %278 = vperm.xlu0 %277, %v264
      %v279 = vpop.permute.xlu0 %278
      %282 = vset.pattern.permute.xlu0 0
      %283 = vperm.xlu0 %282, %v265
      %v284 = vpop.permute.xlu0 %283
      %vm286 = vcmask 130048
      %v288 = vsel %vm286, %v258, 0
      %v291 = vsel %vm286, %v259, 0
      %v294 = vsel %vm286, %v260, 0
      %v297 = vsel %vm286, %v261, 0
      %299 = vmatprep.subr.mxu0 0.0
      %300 = vmatpush1.msra.mxu0 0.0
      %301 = vmatprep.subr.mxu0 0.0
      %302 = vmatpush1.msra.mxu0 0.0
      %303 = vmatprep.subr.mxu0 0.0
      %304 = vmatpush1.msra.mxu0 0.0
      %305 = vmatprep.subr.mxu0 0.0
      %306 = vmatpush1.msra.mxu0 0.0
      %307 = vmatprep.subr.mxu0 0.0
      %308 = vmatpush1.msra.mxu0 0.0
      %309 = vmatprep.subr.mxu0 0.0
      %310 = vmatpush1.msra.mxu0 0.0
      %311 = vmatprep.subr.mxu0 0.0
      %312 = vmatpush1.msra.mxu0 0.0
      %313 = vmatprep.subr.mxu0 0.0
      %314 = vmatpush1.msra.mxu0 0.0
      %315 = vmatprep.subr.mxu0 0.0
      %316 = vmatpush1.msra.mxu0 0.0
      %317 = vmatprep.subr.mxu0 0.0
      %318 = vmatpush1.msra.mxu0 0.0
      %319 = vmatprep.subr.mxu0 0.0
      %320 = vmatpush1.msra.mxu0 0.0
      %321 = vmatprep.subr.mxu0 0.0
      %322 = vmatpush1.msra.mxu0 0.0
      %323 = vmatprep.subr.mxu0 0.0
      %324 = vmatpush1.msra.mxu0 0.0
      %325 = vmatprep.subr.mxu0 0.0
      %326 = vmatpush1.msra.mxu0 0.0
      %327 = vmatprep.subr.mxu0 0.0
      %328 = vmatpush1.msra.mxu0 %v257
      %329 = vmatprep.subr.mxu0 0.0
      %330 = vmatpush1.msra.mxu0 %v256
      %331 = vmatprep.subr.mxu0 0.0
      %332 = vmatpush2.msra.mxu0 0.0
      %333 = vmatprep.subr.mxu0 0.0
      %334 = vmatpush2.msra.mxu0 0.0
      %335 = vmatprep.subr.mxu0 0.0
      %336 = vmatpush2.msra.mxu0 0.0
      %337 = vmatprep.subr.mxu0 0.0
      %338 = vmatpush2.msra.mxu0 0.0
      %339 = vmatprep.subr.mxu0 0.0
      %340 = vmatpush2.msra.mxu0 0.0
      %341 = vmatprep.subr.mxu0 0.0
      %342 = vmatpush2.msra.mxu0 0.0
      %343 = vmatprep.subr.mxu0 0.0
      %344 = vmatpush2.msra.mxu0 0.0
      %345 = vmatprep.subr.mxu0 0.0
      %346 = vmatpush2.msra.mxu0 0.0
      %347 = vmatprep.subr.mxu0 0.0
      %348 = vmatpush2.msra.mxu0 0.0
      %349 = vmatprep.subr.mxu0 0.0
      %350 = vmatpush2.msra.mxu0 0.0
      %351 = vmatprep.subr.mxu0 0.0
      %352 = vmatpush2.msra.mxu0 0.0
      %353 = vmatprep.subr.mxu0 0.0
      %354 = vmatpush2.msra.mxu0 0.0
      %355 = vmatprep.subr.mxu0 0.0
      %356 = vmatpush2.msra.mxu0 0.0
      %357 = vmatprep.subr.mxu0 0.0
      %358 = vmatpush2.msra.mxu0 0.0
      %359 = vmatprep.subr.mxu0 0.0
      %360 = vmatpush2.msra.mxu0 0.0
      %361 = vmatprep.subr.mxu0 0.0
      %362 = vmatpush2.msra.mxu0 0.0
      %363 = vmatprep.mubr.f32.mxu0 0.0
      %364 = vmatmul.mubr.f32.gmra.mxu0 %v288
      %v365 = vpop.f32.mrf.mxu0
      %v366 = vadd.f32 %v269, %v365
      %v367 = vpop.f32.mrf.mxu0
      %368 = vmatprep.mubr.f32.mxu0 0.0
      %369 = vmatmul.mubr.f32.gmra.mxu0 %v291
      %v370 = vpop.f32.mrf.mxu0
      %v371 = vadd.f32 %v274, %v370
      %v372 = vpop.f32.mrf.mxu0
      %373 = vmatprep.mubr.f32.mxu0 0.0
      %374 = vmatmul.mubr.f32.gmra.mxu0 %v294
      %v375 = vpop.f32.mrf.mxu0
      %v376 = vadd.f32 %v279, %v375
      %v377 = vpop.f32.mrf.mxu0
      %378 = vmatprep.mubr.f32.mxu0 0.0
      %379 = vmatmul.mubr.f32.gmra.mxu0 %v297
      %v380 = vpop.f32.mrf.mxu0
      %v381 = vadd.f32 %v284, %v380
      %v382 = vpop.f32.mrf.mxu0
      %383 = vdwg.mxu0
      %v384 = vmax.f32 %v366, 0.0
      %v385 = vmax.f32 %v371, 0.0
      %v386 = vmax.f32 %v376, 0.0
      %v387 = vmax.f32 %v381, 0.0
      %v388 = vsel %vm286, %v384, 0.0
      %v389 = vsel %vm286, %v385, 0.0
      %v390 = vadd.f32 %v388, %v389
      %v391 = vsel %vm286, %v386, 0.0
      %v392 = vadd.f32 %v390, %v391
      %v393 = vsel %vm286, %v387, 0.0
      %v394 = vadd.f32 %v392, %v393
      %v395 = vrot.slane %v394, 4
      %v396 = vadd.f32 %v394, %v395
      %v397 = vrot.slane %v396, 2
      %v398 = vadd.f32 %v396, %v397
      %v399 = vrot.slane %v398, 1
      %v400 = vadd.f32 %v398, %v399
      %v401 = vmul.f32 %v400, 0.03125
      %v402 = vmul.f32 %v384, %v384
      %v403 = vmul.f32 %v385, %v385
      %v404 = vmul.f32 %v386, %v386
      %v405 = vmul.f32 %v387, %v387
      %v406 = vsel %vm286, %v402, 0.0
      %v407 = vsel %vm286, %v403, 0.0
      %v408 = vadd.f32 %v406, %v407
      %v409 = vsel %vm286, %v404, 0.0
      %v410 = vadd.f32 %v408, %v409
      %v411 = vsel %vm286, %v405, 0.0
      %v412 = vadd.f32 %v410, %v411
      %v413 = vrot.slane %v412, 4
      %v414 = vadd.f32 %v412, %v413
      %v415 = vrot.slane %v414, 2
      %v416 = vadd.f32 %v414, %v415
      %v417 = vrot.slane %v416, 1
      %v418 = vadd.f32 %v416, %v417
      %v419 = vmul.f32 %v418, 0.03125
      %v420 = vmul.f32 %v401, %v401
      %v421 = vsub.f32 %v419, %v420
      %v422 = vadd.f32 %v421, 1e-05
      %v423 = vrsqrt.pop %v422
      %v424 = vsub.f32 %v384, %v401
      %v425 = vsub.f32 %v385, %v401
      %v426 = vsub.f32 %v386, %v401
      %v427 = vsub.f32 %v387, %v401
      %v428 = vmul.f32 %v424, %v423
      %v429 = vmul.f32 %v425, %v423
      %v430 = vmul.f32 %v426, %v423
      %v431 = vmul.f32 %v427, %v423
      %v432 = vld [vmem:[%s3] sm:$0xff]
      %v433 = vld [vmem:[%s3 + $0x8] sm:$0xff]
      %v434 = vld [vmem:[%s3 + $0x10] sm:$0xff]
      %v435 = vld [vmem:[%s3 + $0x18] sm:$0xff]
      %437 = vset.pattern.permute.xlu0 0
      %438 = vperm.xlu0 %437, %v432
      %v439 = vpop.permute.xlu0 %438
      %442 = vset.pattern.permute.xlu0 0
      %443 = vperm.xlu0 %442, %v433
      %v444 = vpop.permute.xlu0 %443
      %447 = vset.pattern.permute.xlu0 0
      %448 = vperm.xlu0 %447, %v434
      %v449 = vpop.permute.xlu0 %448
      %452 = vset.pattern.permute.xlu0 0
      %453 = vperm.xlu0 %452, %v435
      %v454 = vpop.permute.xlu0 %453
      %v456 = vmul.f32 %v428, %v439
      %v457 = vmul.f32 %v429, %v444
      %v458 = vmul.f32 %v430, %v449
      %v459 = vmul.f32 %v431, %v454
      %v460 = vld [vmem:[%s4] sm:$0xff]
      %v461 = vld [vmem:[%s4 + $0x8] sm:$0xff]
      %v462 = vld [vmem:[%s4 + $0x10] sm:$0xff]
      %v463 = vld [vmem:[%s4 + $0x18] sm:$0xff]
      %465 = vset.pattern.permute.xlu0 0
      %466 = vperm.xlu0 %465, %v460
      %v467 = vpop.permute.xlu0 %466
      %470 = vset.pattern.permute.xlu0 0
      %471 = vperm.xlu0 %470, %v461
      %v472 = vpop.permute.xlu0 %471
      %475 = vset.pattern.permute.xlu0 0
      %476 = vperm.xlu0 %475, %v462
      %v477 = vpop.permute.xlu0 %476
      %480 = vset.pattern.permute.xlu0 0
      %481 = vperm.xlu0 %480, %v463
      %v482 = vpop.permute.xlu0 %481
      %v484 = vadd.f32 %v456, %v467
      %v485 = vadd.f32 %v457, %v472
      %v486 = vadd.f32 %v458, %v477
      %v487 = vadd.f32 %v459, %v482
      %488 = vst.msk [vmem:[%s255] sm:$0xff] %vm286, %v484
      %489 = vst.msk [vmem:[%s255 + $0x8] sm:$0xff] %vm286, %v485
      %490 = vst.msk [vmem:[%s255 + $0x10] sm:$0xff] %vm286, %v486
      %491 = vst.msk [vmem:[%s255 + $0x18] sm:$0xff] %vm286, %v487
      %p492 = scmp.lt.s32.totalorder %s20, 1
      %s493 = scalar_select %p492, %s20, 1
      %p494 = scmp.lt.s32.totalorder %s21, 0
      %s495 = scalar_select %p494, %s21, 0
      %s496 = smul.addr %s493, 4
      %s497 = sadd.s32 %s495, %s496
      %s498 = smul.addr %s497, 8
      %s499 = scalar_lea.vmem %s5, %s498
      // Predicated region
      $region41: #{tpu_custom_call.1} parent=39 // pred_check
        %p500 = pneg %p160
      $region42: #{tpu_custom_call.1} parent=39 // pred_check_branch
        %502 = sbr.rel (%p500) target = $region44
      $region43: #{tpu_custom_call.1} parent=39 // pred_region
        _
      $region44: #{tpu_custom_call.1} parent=39 // pred_fallthru
        _
    $region40: #{tpu_custom_call.1} parent=5 // pred_fallthru
      _
    %p503 = scmp.le.s32.totalorder 2, %s11
    // Predicated region
    $region45: #{tpu_custom_call.1} parent=5 // pred_check
      %p504 = pneg %p503
    $region46: #{tpu_custom_call.1} parent=5 // pred_check_branch
      %506 = sbr.rel (%p504) target = $region48
    $region47: #{tpu_custom_call.1} parent=5 // pred_region
      %s507 = ssub.s32 %s11, 2
      // Predicated region
      $region49: #{tpu_custom_call.1} parent=47 // pred_check
        %p508 = pneg %p166
      $region50: #{tpu_custom_call.1} parent=47 // pred_check_branch
        %510 = sbr.rel (%p508) target = $region52
      $region51: #{tpu_custom_call.1} parent=47 // pred_region
        %p511 = scmp.lt.s32.totalorder %s22, 1
        %s512 = scalar_select %p511, %s22, 1
        %p513 = scmp.lt.s32.totalorder %s23, 0
        %s514 = scalar_select %p513, %s23, 0
        %s515 = smul.addr %s512, 4
        %s516 = sadd.s32 %s514, %s515
        %s517 = smul.addr %s516, 8
        %s518 = scalar_lea.vmem %s5, %s517
      $region52: #{tpu_custom_call.1} parent=47 // pred_fallthru
        _
    $region48: #{tpu_custom_call.1} parent=5 // pred_fallthru
      _
  $region6: #{tpu_custom_call.1} parent=0 // loop_footer
    %s15 = sadd.s32 1, %s11
  $region7: #{tpu_custom_call.1} parent=0 // loop_footer_branch
    %10 = sbr.rel target = $region3
  $region8: #{tpu_custom_call.1} parent=0 // loop_exit
    _

</llo_original>
